<compile_context>
chip_gen: v5e
topology: v5e:2x2
jax: 0.10.0
libtpu: 0.0.40
codegen_flags: <defaults>
</compile_context>

<pallas_src>
import functools

import jax
import jax.numpy as jnp
from jax.experimental import pallas as pl
from jax.experimental.pallas import tpu as pltpu


def _round_up(v, m):
    return ((v + m - 1) // m) * m


def _dae_kernel(x_ref, we_ref, be_ref, wd_ref, bd_ref, out_ref, *, compute_dtype):
    """One batch tile: out = sigmoid(sigmoid(x @ We^T + be) @ Wd^T + bd).

    we_ref is We^T (in, hidden) and wd_ref is Wd^T (hidden, in): pre-transposed
    once in the wrapper so both dots are plain (1,)x(0,) contractions on the MXU
    with no in-kernel transpose.  Accumulation is always f32; bias add and the
    sigmoids run in f32 on the VPU/EUP.
    """
    x = x_ref[...].astype(compute_dtype)          # on-chip cast, no HBM round-trip
    h = jnp.dot(x, we_ref[...], preferred_element_type=jnp.float32)
    h = jax.nn.sigmoid(h + be_ref[...])           # f32 activations
    y = jnp.dot(h.astype(compute_dtype), wd_ref[...],
                preferred_element_type=jnp.float32)
    out_ref[...] = jax.nn.sigmoid(y + bd_ref[...]).astype(out_ref.dtype)


def dae_forward(x, w_enc, b_enc, w_dec, b_dec, *,
                block_batch=1024, min_batch_tiles=4,
                compute_dtype=None, out_dtype=None, pad_features=True):
    """x: (B, input_size); w_enc: (hidden, input); w_dec: (input, hidden)."""
    B, in_size = x.shape
    hidden, in_size_w = w_enc.shape
    assert in_size_w == in_size and w_dec.shape == (in_size, hidden)
    assert b_enc.shape == (hidden,) and b_dec.shape == (in_size,)

    if compute_dtype is None:
        compute_dtype = x.dtype
    compute_dtype = jnp.dtype(compute_dtype)
    if out_dtype is None:
        out_dtype = compute_dtype                 # bf16 path -> bf16 stores
    out_dtype = jnp.dtype(out_dtype)

    # --- Lane-dense feature dims (pad to multiples of 128). -----------------
    in_p = _round_up(in_size, 128) if pad_features else in_size
    hid_p = _round_up(hidden, 128) if pad_features else hidden

    # One-time wrapper-side weight prep (tiny vs. x): cast to compute dtype,
    # transpose to (contracting, out) layout, zero-pad to lane multiples.
    we_t = jnp.zeros((in_p, hid_p), compute_dtype).at[:in_size, :hidden].set(
        w_enc.T.astype(compute_dtype))
    wd_t = jnp.zeros((hid_p, in_p), compute_dtype).at[:hidden, :in_size].set(
        w_dec.T.astype(compute_dtype))
    be = jnp.zeros((1, hid_p), jnp.float32).at[:, :hidden].set(
        b_enc.astype(jnp.float32))
    bd = jnp.zeros((1, in_p), jnp.float32).at[:, :in_size].set(
        b_dec.astype(jnp.float32))
    if in_p != in_size:
        # TODO(synk): in production store x padded upstream to avoid this copy.
        x_in = jnp.zeros((B, in_p), x.dtype).at[:, :in_size].set(x)
    else:
        x_in = x

    # --- Batch tile: multiple of 8 sublanes, >= min_batch_tiles grid steps so
    # dual-TC chips get >=2 steps/core and each core still software-pipelines;
    # capped by block_batch (sweep upward on single-TC v5e/v6e for large B).
    tb = min(block_batch, B)
    if B > 8 * min_batch_tiles:
        tb = min(tb, _round_up(pl.cdiv(B, min_batch_tiles), 8))
    if tb < B:
        tb = max(8, _round_up(tb, 8))
    grid = (pl.cdiv(B, tb),)

    # --- Cost estimate (helps XLA schedule around the custom call). ---------
    flops = 4 * B * in_p * hid_p                              # two matmuls
    transcendentals = 2 * B * (in_p + hid_p)                  # two sigmoids
    bytes_accessed = int(
        x_in.size * x_in.dtype.itemsize
        + B * in_p * out_dtype.itemsize
        + (we_t.size + wd_t.size) * compute_dtype.itemsize
        + (be.size + bd.size) * 4)
    cost = pl.CostEstimate(flops=flops, transcendentals=transcendentals,
                           bytes_accessed=bytes_accessed)

    # --- Raise the scoped VMEM limit only when needed (v5e default is 16 MiB).
    # Estimate: double-buffered x/out tiles + (double-buffered) resident weights
    # + f32 intermediates.  TODO(synk): pipeline_mode=pl.Buffered(1) on the
    # constant-index weight specs would drop their second buffer if VMEM gets
    # tight on v7x (64 MiB physical) as the model scales.
    vmem_est = (2 * tb * in_p * (x_in.dtype.itemsize + out_dtype.itemsize)
                + 2 * (we_t.size + wd_t.size) * compute_dtype.itemsize
                + 2 * (be.size + bd.size) * 4
                + 2 * tb * (in_p + hid_p) * 4)
    compiler_kwargs = {}
    if vmem_est > 16 * 1024 * 1024:
        compiler_kwargs["vmem_limit_bytes"] = min(int(vmem_est * 1.25),
                                                  100 * 1024 * 1024)

    kernel = functools.partial(_dae_kernel, compute_dtype=compute_dtype)
    out_p = pl.pallas_call(
        kernel,
        out_shape=jax.ShapeDtypeStruct((B, in_p), out_dtype),
        grid=grid,
        in_specs=[
            pl.BlockSpec((tb, in_p), lambda i: (i, 0)),        # x tile (pipelined)
            pl.BlockSpec((in_p, hid_p), lambda i: (0, 0)),     # We^T (VMEM-resident)
            pl.BlockSpec((1, hid_p), lambda i: (0, 0)),        # be
            pl.BlockSpec((hid_p, in_p), lambda i: (0, 0)),     # Wd^T (VMEM-resident)
            pl.BlockSpec((1, in_p), lambda i: (0, 0)),         # bd
        ],
        out_specs=pl.BlockSpec((tb, in_p), lambda i: (i, 0)),
        compiler_params=pltpu.CompilerParams(
            dimension_semantics=("parallel",), **compiler_kwargs),
        cost_estimate=cost,
    )(x_in, we_t, be, wd_t, bd)

    if in_p != in_size:
        out_p = out_p[:, :in_size]
    return out_p


def reference_forward(x, w_enc, b_enc, w_dec, b_dec):
    h = jax.nn.sigmoid(x @ w_enc.T + b_enc)
    return jax.nn.sigmoid(h @ w_dec.T + b_dec)


def _make_params(key, batch, input_size, hidden_size):
    k_x, k_we, k_be, k_wd, k_bd = jax.random.split(key, 5)
    x = jax.random.normal(k_x, (batch, input_size), jnp.float32)
    w_enc = jax.random.normal(k_we, (hidden_size, input_size), jnp.float32) * 0.1
    b_enc = jax.random.normal(k_be, (hidden_size,), jnp.float32) * 0.1
    w_dec = jax.random.normal(k_wd, (input_size, hidden_size), jnp.float32) * 0.1
    b_dec = jax.random.normal(k_bd, (input_size,), jnp.float32) * 0.1
    return x, w_enc, b_enc, w_dec, b_dec


if __name__ == "__main__":
    key = jax.random.PRNGKey(0)
    k_main, k_small, k_part = jax.random.split(key, 3)

    # --- Case 1: lane-dense feature dims (128), multi-tile batch grid
    # (B=64 -> tb=16, grid=(4,) -> >=2 steps/TensorCore on dual-TC chips).
    batch, input_size, hidden_size = 64, 128, 128
    x, w_enc, b_enc, w_dec, b_dec = _make_params(k_main, batch, input_size, hidden_size)
    ref = reference_forward(x, w_enc, b_enc, w_dec, b_dec)

    out_f32 = dae_forward(x, w_enc, b_enc, w_dec, b_dec)
    jax.block_until_ready(out_f32)
    assert out_f32.shape == (batch, input_size) and out_f32.dtype == jnp.float32
    assert jnp.allclose(out_f32, ref, atol=1e-5, rtol=1e-5)

    # Same kernel on the bf16 path: x cast on-chip, bf16 weights, bf16 output.
    out_bf16 = dae_forward(x, w_enc, b_enc, w_dec, b_dec, compute_dtype=jnp.bfloat16)
    jax.block_until_ready(out_bf16)
    assert out_bf16.dtype == jnp.bfloat16
    assert jnp.allclose(out_bf16.astype(jnp.float32), ref, atol=3e-2, rtol=3e-2)

    # --- Case 2: tiny shapes matching the original module style (8, 32, 16).
    # Exercises both the feature-padding path and the unpadded (masked-store) path.
    b2, i2, h2 = 8, 32, 16
    x2, we2, be2, wd2, bd2 = _make_params(k_small, b2, i2, h2)
    ref2 = reference_forward(x2, we2, be2, wd2, bd2)
    out2 = dae_forward(x2, we2, be2, wd2, bd2)                       # padded to 128
    out2_np = dae_forward(x2, we2, be2, wd2, bd2, pad_features=False)  # masked stores
    jax.block_until_ready((out2, out2_np))
    assert out2.shape == (b2, i2) and out2_np.shape == (b2, i2)
    assert jnp.allclose(out2, ref2, atol=1e-5, rtol=1e-5)
    assert jnp.allclose(out2_np, ref2, atol=1e-5, rtol=1e-5)

    # --- Case 3: partial final batch tile (B=50 -> tb=16, last tile has 2 rows).
    b3 = 50
    x3, we3, be3, wd3, bd3 = _make_params(k_part, b3, input_size, hidden_size)
    out3 = dae_forward(x3, we3, be3, wd3, bd3)
    jax.block_until_ready(out3)
    assert jnp.allclose(out3, reference_forward(x3, we3, be3, wd3, bd3),
                        atol=1e-5, rtol=1e-5)

    print("KERNEL_OK")
</pallas_src>

<mosaic_0001>
module attributes {stable_mosaic.version = 11 : i64} {
  func.func @_dae_kernel(%arg0: i32, %arg1: memref<16x128xf32, #tpu.memory_space<vmem>>, %arg2: memref<128x128xf32, #tpu.memory_space<vmem>>, %arg3: memref<1x128xf32, #tpu.memory_space<vmem>>, %arg4: memref<128x128xf32, #tpu.memory_space<vmem>>, %arg5: memref<1x128xf32, #tpu.memory_space<vmem>>, %arg6: memref<16x128xf32, #tpu.memory_space<vmem>>) attributes {dimension_semantics = [#tpu.dimension_semantics<parallel>], iteration_bounds = array<i64: 4>, scalar_prefetch = 0 : i64, scratch_operands = 0 : i64, tpu.core_type = #tpu.core_type<tc>, window_params = [{transform_indices = @transform_0, window_bounds = array<i64: 16, 128>}, {pipeline_mode = #tpu.pipeline_mode<synchronous>, transform_indices = @transform_1, window_bounds = array<i64: 128, 128>}, {pipeline_mode = #tpu.pipeline_mode<synchronous>, transform_indices = @transform_2, window_bounds = array<i64: 1, 128>}, {pipeline_mode = #tpu.pipeline_mode<synchronous>, transform_indices = @transform_3, window_bounds = array<i64: 128, 128>}, {pipeline_mode = #tpu.pipeline_mode<synchronous>, transform_indices = @transform_4, window_bounds = array<i64: 1, 128>}, {transform_indices = @transform_5, window_bounds = array<i64: 16, 128>}]} {
    %c0 = arith.constant 0 : index
    %c0_0 = arith.constant 0 : index
    %0 = vector.load %arg1[%c0, %c0_0] : memref<16x128xf32, #tpu.memory_space<vmem>>, vector<16x128xf32>
    %c0_1 = arith.constant 0 : index
    %c0_2 = arith.constant 0 : index
    %1 = vector.load %arg2[%c0_1, %c0_2] : memref<128x128xf32, #tpu.memory_space<vmem>>, vector<128x128xf32>
    %cst = arith.constant dense<0.000000e+00> : vector<16x128xf32>
    %2 = tpu.matmul %0, %1, %cst {dimension_numbers = #tpu.dot_dimension_numbers<[1], [0], [0], [1], [0, 0, 1, 1], [], []>} : vector<16x128xf32>, vector<128x128xf32>, vector<16x128xf32> -> vector<16x128xf32>
    %c0_3 = arith.constant 0 : index
    %c0_4 = arith.constant 0 : index
    %3 = vector.load %arg3[%c0_3, %c0_4] : memref<1x128xf32, #tpu.memory_space<vmem>>, vector<1x128xf32>
    %4 = vector.broadcast %3 : vector<1x128xf32> to vector<16x128xf32>
    %5 = arith.addf %2, %4 : vector<16x128xf32>
    %6 = arith.negf %5 : vector<16x128xf32>
    %7 = math.exp %6 : vector<16x128xf32>
    %cst_5 = arith.constant 1.000000e+00 : f32
    %8 = vector.broadcast %cst_5 : f32 to vector<16x128xf32>
    %9 = arith.addf %8, %7 : vector<16x128xf32>
    %10 = arith.divf %8, %9 : vector<16x128xf32>
    %c0_6 = arith.constant 0 : index
    %c0_7 = arith.constant 0 : index
    %11 = vector.load %arg4[%c0_6, %c0_7] : memref<128x128xf32, #tpu.memory_space<vmem>>, vector<128x128xf32>
    %cst_8 = arith.constant dense<0.000000e+00> : vector<16x128xf32>
    %12 = tpu.matmul %10, %11, %cst_8 {dimension_numbers = #tpu.dot_dimension_numbers<[1], [0], [0], [1], [0, 0, 1, 1], [], []>} : vector<16x128xf32>, vector<128x128xf32>, vector<16x128xf32> -> vector<16x128xf32>
    %c0_9 = arith.constant 0 : index
    %c0_10 = arith.constant 0 : index
    %13 = vector.load %arg5[%c0_9, %c0_10] : memref<1x128xf32, #tpu.memory_space<vmem>>, vector<1x128xf32>
    %14 = vector.broadcast %13 : vector<1x128xf32> to vector<16x128xf32>
    %15 = arith.addf %12, %14 : vector<16x128xf32>
    %16 = arith.negf %15 : vector<16x128xf32>
    %17 = math.exp %16 : vector<16x128xf32>
    %cst_11 = arith.constant 1.000000e+00 : f32
    %18 = vector.broadcast %cst_11 : f32 to vector<16x128xf32>
    %19 = arith.addf %18, %17 : vector<16x128xf32>
    %20 = arith.divf %18, %19 : vector<16x128xf32>
    %c0_12 = arith.constant 0 : index
    %c0_13 = arith.constant 0 : index
    %21 = vector.load %arg6[%c0_12, %c0_13] : memref<16x128xf32, #tpu.memory_space<vmem>>, vector<16x128xf32>
    tpu.vector_store %arg6[%c0_12, %c0_13], %20 {strides = array<i32>} : memref<16x128xf32, #tpu.memory_space<vmem>>, vector<16x128xf32>,
    return
  }
  func.func @transform_0(%arg0: i32) -> (i32, i32) {
    %c0_i32 = arith.constant 0 : i32
    %c0_i32_0 = arith.constant 0 : i32
    return %arg0, %c0_i32 : i32, i32
  }
  func.func @transform_1(%arg0: i32) -> (i32, i32) {
    %c0_i32 = arith.constant 0 : i32
    %c0_i32_0 = arith.constant 0 : i32
    %c0_i32_1 = arith.constant 0 : i32
    return %c0_i32, %c0_i32_0 : i32, i32
  }
  func.func @transform_2(%arg0: i32) -> (i32, i32) {
    %c0_i32 = arith.constant 0 : i32
    %c0_i32_0 = arith.constant 0 : i32
    %c0_i32_1 = arith.constant 0 : i32
    return %c0_i32, %c0_i32_0 : i32, i32
  }
  func.func @transform_3(%arg0: i32) -> (i32, i32) {
    %c0_i32 = arith.constant 0 : i32
    %c0_i32_0 = arith.constant 0 : i32
    %c0_i32_1 = arith.constant 0 : i32
    return %c0_i32, %c0_i32_0 : i32, i32
  }
  func.func @transform_4(%arg0: i32) -> (i32, i32) {
    %c0_i32 = arith.constant 0 : i32
    %c0_i32_0 = arith.constant 0 : i32
    %c0_i32_1 = arith.constant 0 : i32
    return %c0_i32, %c0_i32_0 : i32, i32
  }
  func.func @transform_5(%arg0: i32) -> (i32, i32) {
    %c0_i32 = arith.constant 0 : i32
    %c0_i32_0 = arith.constant 0 : i32
    return %arg0, %c0_i32 : i32, i32
  }
}

</mosaic_0001>

<llo_original>
// kernel: tpu_custom_call.1
$region0: #{tpu_custom_call.1}
  #allocation0 [shape = 'u32[]', space=smem, size = 0x4, offset = 0x4, fixed_abs, tag = 'smem constant byte address 0x4 - core index']
  #allocation1 [shape = 'u32[72,128]{1,0:T(1,128)}', space=vmem, size = 0x9000, scoped, tag = 'internal scratch']
  %s0 = inlined_call_operand.hbm [shape: f32[64,128], index: 0, kind: input, shape index: {}]
  %s1 = inlined_call_operand.hbm [shape: f32[128,128], index: 1, kind: input, shape index: {}]
  %s2 = inlined_call_operand.vmem [shape: f32[1,128], index: 2, kind: input, shape index: {}]
  %s3 = inlined_call_operand.hbm [shape: f32[128,128], index: 3, kind: input, shape index: {}]
  %s4 = inlined_call_operand.vmem [shape: f32[1,128], index: 4, kind: input, shape index: {}]
  %s5 = inlined_call_operand.hbm [shape: f32[64,128], index: 5, kind: output, shape index: {}]
  %s6 = sld [smem:[#allocation0]]
  $region65: #{tpu_custom_call.1} parent=0
    _
  %s8 = ssub.s32 1, %s6
  %s9 = scalar_select 0, %s8, %s6
  $region1: #{tpu_custom_call.1} parent=0
    #allocation2 [shape = 'u8[16384]{0}', space=vmem, size = 0x4000, scoped, tag = 'input window, operand 0']
    #allocation3 [shape = 's32[2]{0}', space=sflag, size = 0x8, scoped, tag = 'scoped memory for tpu_custom_call.1']
    #allocation4 [shape = 's32[2]{0}', space=sflag, size = 0x8, scoped, tag = 'scoped memory for tpu_custom_call.1']
    #allocation5 [shape = 'u8[65536]{0}', space=vmem, size = 0x10000, scoped, tag = 'input window, operand 1, single buffered']
    #allocation6 [shape = 's32[1]{0}', space=sflag, size = 0x4, scoped, tag = 'scoped memory for tpu_custom_call.1']
    #allocation7 [shape = 'u8[65536]{0}', space=vmem, size = 0x10000, scoped, tag = 'input window, operand 3, single buffered']
    #allocation8 [shape = 'u8[16384]{0}', space=vmem, size = 0x4000, scoped, tag = 'output window, operand 0']
    %10 = vsyncpa [#allocation3], 0
    %s11 = scalar_lea.sflag [#allocation3], 1
    %12 = vsyncpa %s11, 0
    %13 = vsyncpa [#allocation6], 0
    %14 = vsyncpa [#allocation4], 0
    %s15 = scalar_lea.sflag [#allocation4], 1
    %16 = vsyncpa %s15, 0
    loop: start=0, step=1, limit=6
    $region2: #{tpu_custom_call.1} parent=1 // loop_pre_header
      _
    $region3: #{tpu_custom_call.1} parent=1 // loop_header
      %s18 = sphi 0, %s22
      %p19 = scmp.ge.s32.totalorder %s18, 6
      %s28 = sphi 0, %s30
      %s31 = sphi 0, %s28
      %s32 = sphi 0, %s31
      %s48 = sphi 0, %s32
      %s52 = sphi 0, %s52
      %s54 = sphi 0, %s52
      %s55 = sphi 0, %s54
      %s69 = sphi 0, %s55
      %s73 = sphi 0, %s73
      %s75 = sphi 0, %s73
      %s76 = sphi 0, %s75
      %s90 = sphi 0, %s76
      %s94 = sphi 0, %s94
      %s96 = sphi 0, %s94
      %s97 = sphi 0, %s96
      %s111 = sphi 0, %s97
      %s115 = sphi 0, %s115
      %s117 = sphi 0, %s115
      %s118 = sphi 0, %s117
      %s132 = sphi 0, %s118
      %s138 = sphi 0, %s140
      %s141 = sphi 0, %s138
      %s142 = sphi 0, %s141
      %s158 = sphi 0, %s142
    $region4: #{tpu_custom_call.1} parent=1 // loop_header_branch
      %21 = sbr.rel (%p19) target = $region8
    $region5: #{tpu_custom_call.1} parent=1 // loop_body
      %s23 = ssub.s32 %s18, 1
      %s24 = ssub.s32 %s18, 2
      %s25 = sadd.s32 %s18, 1
      %s26 = ssub.s32 %s18, %s25
      %p27 = scmp.eq.s32.totalorder %s26, 0
      %s29 = sadd.s32 %s28, 1
      %s30 = scalar_select %p27, %s28, %s29
      %p33 = pneg %p27
      %p34 = scmp.eq.s32.totalorder %s18, 3
      %p35 = por %p33, %p34
      %p36 = scmp.ne.s32.totalorder %s28, %s31
      %p37 = scmp.eq.s32.totalorder %s18, 0
      %p38 = por %p36, %p37
      %p39 = scmp.ne.s32.totalorder %s28, %s31
      %p40 = scmp.eq.s32.totalorder %s23, 3
      %p41 = por %p39, %p40
      %p42 = scmp.ne.s32.totalorder %s31, %s32
      %p43 = scmp.eq.s32.totalorder %s23, 0
      %p44 = por %p42, %p43
      %p45 = scmp.ne.s32.totalorder %s31, %s32
      %p46 = scmp.eq.s32.totalorder %s24, 3
      %p47 = por %p45, %p46
      %p49 = scmp.ne.s32.totalorder %s32, %s48
      %p50 = scmp.eq.s32.totalorder %s24, 0
      %p51 = por %p49, %p50
      %s53 = sadd.s32 %s52, 1
      %p56 = scmp.eq.s32.totalorder %s18, 3
      %p57 = scmp.ne.s32.totalorder %s52, %s54
      %p58 = scmp.eq.s32.totalorder %s18, 0
      %p59 = por %p57, %p58
      %p60 = scmp.ne.s32.totalorder %s52, %s54
      %p61 = scmp.eq.s32.totalorder %s23, 3
      %p62 = por %p60, %p61
      %p63 = scmp.ne.s32.totalorder %s54, %s55
      %p64 = scmp.eq.s32.totalorder %s23, 0
      %p65 = por %p63, %p64
      %p66 = scmp.ne.s32.totalorder %s54, %s55
      %p67 = scmp.eq.s32.totalorder %s24, 3
      %p68 = por %p66, %p67
      %p70 = scmp.ne.s32.totalorder %s55, %s69
      %p71 = scmp.eq.s32.totalorder %s24, 0
      %p72 = por %p70, %p71
      %s74 = sadd.s32 %s73, 1
      %p77 = scmp.eq.s32.totalorder %s18, 3
      %p78 = scmp.ne.s32.totalorder %s73, %s75
      %p79 = scmp.eq.s32.totalorder %s18, 0
      %p80 = por %p78, %p79
      %p81 = scmp.ne.s32.totalorder %s73, %s75
      %p82 = scmp.eq.s32.totalorder %s23, 3
      %p83 = por %p81, %p82
      %p84 = scmp.ne.s32.totalorder %s75, %s76
      %p85 = scmp.eq.s32.totalorder %s23, 0
      %p86 = por %p84, %p85
      %p87 = scmp.ne.s32.totalorder %s75, %s76
      %p88 = scmp.eq.s32.totalorder %s24, 3
      %p89 = por %p87, %p88
      %p91 = scmp.ne.s32.totalorder %s76, %s90
      %p92 = scmp.eq.s32.totalorder %s24, 0
      %p93 = por %p91, %p92
      %s95 = sadd.s32 %s94, 1
      %p98 = scmp.eq.s32.totalorder %s18, 3
      %p99 = scmp.ne.s32.totalorder %s94, %s96
      %p100 = scmp.eq.s32.totalorder %s18, 0
      %p101 = por %p99, %p100
      %p102 = scmp.ne.s32.totalorder %s94, %s96
      %p103 = scmp.eq.s32.totalorder %s23, 3
      %p104 = por %p102, %p103
      %p105 = scmp.ne.s32.totalorder %s96, %s97
      %p106 = scmp.eq.s32.totalorder %s23, 0
      %p107 = por %p105, %p106
      %p108 = scmp.ne.s32.totalorder %s96, %s97
      %p109 = scmp.eq.s32.totalorder %s24, 3
      %p110 = por %p108, %p109
      %p112 = scmp.ne.s32.totalorder %s97, %s111
      %p113 = scmp.eq.s32.totalorder %s24, 0
      %p114 = por %p112, %p113
      %s116 = sadd.s32 %s115, 1
      %p119 = scmp.eq.s32.totalorder %s18, 3
      %p120 = scmp.ne.s32.totalorder %s115, %s117
      %p121 = scmp.eq.s32.totalorder %s18, 0
      %p122 = por %p120, %p121
      %p123 = scmp.ne.s32.totalorder %s115, %s117
      %p124 = scmp.eq.s32.totalorder %s23, 3
      %p125 = por %p123, %p124
      %p126 = scmp.ne.s32.totalorder %s117, %s118
      %p127 = scmp.eq.s32.totalorder %s23, 0
      %p128 = por %p126, %p127
      %p129 = scmp.ne.s32.totalorder %s117, %s118
      %p130 = scmp.eq.s32.totalorder %s24, 3
      %p131 = por %p129, %p130
      %p133 = scmp.ne.s32.totalorder %s118, %s132
      %p134 = scmp.eq.s32.totalorder %s24, 0
      %p135 = por %p133, %p134
      %s136 = ssub.s32 %s18, %s25
      %p137 = scmp.eq.s32.totalorder %s136, 0
      %s139 = sadd.s32 %s138, 1
      %s140 = scalar_select %p137, %s138, %s139
      %p143 = pneg %p137
      %p144 = scmp.eq.s32.totalorder %s18, 3
      %p145 = por %p143, %p144
      %p146 = scmp.ne.s32.totalorder %s138, %s141
      %p147 = scmp.eq.s32.totalorder %s18, 0
      %p148 = por %p146, %p147
      %p149 = scmp.ne.s32.totalorder %s138, %s141
      %p150 = scmp.eq.s32.totalorder %s23, 3
      %p151 = por %p149, %p150
      %p152 = scmp.ne.s32.totalorder %s141, %s142
      %p153 = scmp.eq.s32.totalorder %s23, 0
      %p154 = por %p152, %p153
      %p155 = scmp.ne.s32.totalorder %s141, %s142
      %p156 = scmp.eq.s32.totalorder %s24, 3
      %p157 = por %p155, %p156
      %p159 = scmp.ne.s32.totalorder %s142, %s158
      %p160 = scmp.eq.s32.totalorder %s24, 0
      %p161 = por %p159, %p160
      %p162 = scmp.le.s32.totalorder 1, %s18
      %p163 = scmp.lt.s32.totalorder %s18, 5
      %p164 = pnand %p162, %p163
      %p165 = pneg %p164
      // Predicated region
      $region9: #{tpu_custom_call.1} parent=5 // pred_check
        _
      $region10: #{tpu_custom_call.1} parent=5 // pred_check_branch
        %167 = sbr.rel (%p164) target = $region12
      $region11: #{tpu_custom_call.1} parent=5 // pred_region
        %s168 = ssub.s32 %s18, 1
        // Predicated region
        $region13: #{tpu_custom_call.1} parent=11 // pred_check
          %p169 = pneg %p65
        $region14: #{tpu_custom_call.1} parent=11 // pred_check_branch
          %171 = sbr.rel (%p169) target = $region16
        $region15: #{tpu_custom_call.1} parent=11 // pred_region
          %173 = vsyncadd [#allocation6], 0
          %s174 = sshll.u32 %s1, 4
          %s175 = int_to_ptr.hbm [resolvable:$true] %s174
          %s176 = sshll.u32 [#allocation5], 4
          %s177 = int_to_ptr.vmem [resolvable:$true] %s176
          %182 = dma.hbm_to_vmem [thread:$0]  %s175, 2048, %s177, [#allocation6], 128, 128, 8
        $region16: #{tpu_custom_call.1} parent=11 // pred_fallthru
          _
        // Predicated region
        $region17: #{tpu_custom_call.1} parent=11 // pred_check
          %p183 = pneg %p86
        $region18: #{tpu_custom_call.1} parent=11 // pred_check_branch
          %185 = sbr.rel (%p183) target = $region20
        $region19: #{tpu_custom_call.1} parent=11 // pred_region
          _
        $region20: #{tpu_custom_call.1} parent=11 // pred_fallthru
          _
        // Predicated region
        $region21: #{tpu_custom_call.1} parent=11 // pred_check
          %p186 = pneg %p107
        $region22: #{tpu_custom_call.1} parent=11 // pred_check_branch
          %188 = sbr.rel (%p186) target = $region24
        $region23: #{tpu_custom_call.1} parent=11 // pred_region
          %190 = vsyncadd [#allocation6], 0
          %s191 = sshll.u32 %s3, 4
          %s192 = int_to_ptr.hbm [resolvable:$true] %s191
          %s193 = sshll.u32 [#allocation7], 4
          %s194 = int_to_ptr.vmem [resolvable:$true] %s193
          %199 = dma.hbm_to_vmem [thread:$0]  %s192, 2048, %s194, [#allocation6], 128, 128, 8
        $region24: #{tpu_custom_call.1} parent=11 // pred_fallthru
          _
        // Predicated region
        $region25: #{tpu_custom_call.1} parent=11 // pred_check
          %p200 = pneg %p128
        $region26: #{tpu_custom_call.1} parent=11 // pred_check_branch
          %202 = sbr.rel (%p200) target = $region28
        $region27: #{tpu_custom_call.1} parent=11 // pred_region
          _
        $region28: #{tpu_custom_call.1} parent=11 // pred_fallthru
          _
      $region12: #{tpu_custom_call.1} parent=5 // pred_fallthru
        _
      %p203 = scmp.lt.s32.totalorder %s18, 4
      // Predicated region
      $region29: #{tpu_custom_call.1} parent=5 // pred_check
        %p204 = pneg %p203
      $region30: #{tpu_custom_call.1} parent=5 // pred_check_branch
        %206 = sbr.rel (%p204) target = $region32
      $region31: #{tpu_custom_call.1} parent=5 // pred_region
        // Predicated region
        $region33: #{tpu_custom_call.1} parent=31 // pred_check
          %p207 = pneg %p38
        $region34: #{tpu_custom_call.1} parent=31 // pred_check_branch
          %209 = sbr.rel (%p207) target = $region36
        $region35: #{tpu_custom_call.1} parent=31 // pred_region
          %s210 = sand.u32 %s28, 1
          %s211 = scalar_lea.sflag [#allocation3], %s210
          %s212 = sand.u32 %s28, 1
          %s213 = smul.addr %s212, 16
          %s214 = scalar_lea.vmem [#allocation2], %s213
          %s215 = smul.u32 2, %s18
          %217 = vsyncadd %s211, 0
          %s218 = smul.addr %s215, 8
          %s219 = scalar_lea.hbm %s0, %s218
          %s220 = sshll.u32 %s219, 4
          %s221 = int_to_ptr.hbm [resolvable:$true] %s220
          %s222 = sshll.u32 %s214, 4
          %s223 = int_to_ptr.vmem [resolvable:$true] %s222
          %228 = dma.hbm_to_vmem [thread:$0]  %s221, 256, %s223, %s211, 128, 128, 8
        $region36: #{tpu_custom_call.1} parent=31 // pred_fallthru
          _
      $region32: #{tpu_custom_call.1} parent=5 // pred_fallthru
        _
      %p229 = scmp.le.s32.totalorder 1, %s18
      %p230 = scmp.lt.s32.totalorder %s18, 5
      %p231 = pnand %p229, %p230
      %p232 = pneg %p231
      // Predicated region
      $region37: #{tpu_custom_call.1} parent=5 // pred_check
        _
      $region38: #{tpu_custom_call.1} parent=5 // pred_check_branch
        %234 = sbr.rel (%p231) target = $region40
      $region39: #{tpu_custom_call.1} parent=5 // pred_region
        %s235 = ssub.s32 %s18, 1
        %s236 = sand.u32 %s31, 1
        %s237 = scalar_lea.sflag [#allocation3], %s236
        %s238 = sand.u32 %s31, 1
        %s239 = smul.addr %s238, 16
        %s240 = scalar_lea.vmem [#allocation2], %s239
        // Predicated region
        $region41: #{tpu_custom_call.1} parent=39 // pred_check
          %p241 = pneg %p44
        $region42: #{tpu_custom_call.1} parent=39 // pred_check_branch
          %243 = sbr.rel (%p241) target = $region44
        $region43: #{tpu_custom_call.1} parent=39 // pred_region
          %245 = dma.done %s237, 256
        $region44: #{tpu_custom_call.1} parent=39 // pred_fallthru
          _
        // Predicated region
        $region45: #{tpu_custom_call.1} parent=39 // pred_check
          %p246 = pneg %p65
        $region46: #{tpu_custom_call.1} parent=39 // pred_check_branch
          %248 = sbr.rel (%p246) target = $region48
        $region47: #{tpu_custom_call.1} parent=39 // pred_region
          %250 = dma.done [#allocation6], 2048
        $region48: #{tpu_custom_call.1} parent=39 // pred_fallthru
          _
        // Predicated region
        $region49: #{tpu_custom_call.1} parent=39 // pred_check
          %p251 = pneg %p107
        $region50: #{tpu_custom_call.1} parent=39 // pred_check_branch
          %253 = sbr.rel (%p251) target = $region52
        $region51: #{tpu_custom_call.1} parent=39 // pred_region
          %255 = dma.done [#allocation6], 2048
        $region52: #{tpu_custom_call.1} parent=39 // pred_fallthru
          _
        %s256 = sand.u32 %s31, 1
        %s257 = scalar_lea.sflag [#allocation3], %s256
        %s258 = sand.u32 %s31, 1
        %s259 = smul.addr %s258, 16
        %s260 = scalar_lea.vmem [#allocation2], %s259
        %p261 = pneg %p44
        %p262 = pneg %p41
        %p263 = pneg %p65
        %p264 = pneg %p62
        %p265 = pneg %p86
        %p266 = pneg %p83
        %p267 = pneg %p107
        %p268 = pneg %p104
        %p269 = pneg %p128
        %p270 = pneg %p125
        %p271 = pneg %p154
        %p272 = pneg %p151
        %s273 = sand.u32 %s141, 1
        %s274 = scalar_lea.sflag [#allocation4], %s273
        %s275 = sand.u32 %s141, 1
        %s276 = smul.addr %s275, 16
        %s277 = scalar_lea.vmem [#allocation8], %s276
        %s278 = smul.u32 2, %s23
        %s279 = smul.u32 2, %s23
        %v280 = vld [vmem:[%s240] sm:$0xff]
        %v281 = vld [vmem:[%s240 + $0x8] sm:$0xff]
        %v282 = vld [vmem:[#allocation5] sm:$0xff]
        %v283 = vld [vmem:[#allocation5 + $0x8] sm:$0xff]
        %v284 = vld [vmem:[#allocation5 + $0x10] sm:$0xff]
        %v285 = vld [vmem:[#allocation5 + $0x18] sm:$0xff]
        %v286 = vld [vmem:[#allocation5 + $0x20] sm:$0xff]
        %v287 = vld [vmem:[#allocation5 + $0x28] sm:$0xff]
        %v288 = vld [vmem:[#allocation5 + $0x30] sm:$0xff]
        %v289 = vld [vmem:[#allocation5 + $0x38] sm:$0xff]
        %v290 = vld [vmem:[#allocation5 + $0x40] sm:$0xff]
        %v291 = vld [vmem:[#allocation5 + $0x48] sm:$0xff]
        %v292 = vld [vmem:[#allocation5 + $0x50] sm:$0xff]
        %v293 = vld [vmem:[#allocation5 + $0x58] sm:$0xff]
        %v294 = vld [vmem:[#allocation5 + $0x60] sm:$0xff]
        %v295 = vld [vmem:[#allocation5 + $0x68] sm:$0xff]
        %v296 = vld [vmem:[#allocation5 + $0x70] sm:$0xff]
        %v297 = vld [vmem:[#allocation5 + $0x78] sm:$0xff]
        %v298 = vld [vmem:[%s2] sm:$0x1]
        %v300 = vperm.slane %v298, 0
        %302 = vmatpush.msra.mxu0 %v297
        %303 = vmatpush.msra.mxu0 %v296
        %304 = vmatpush.msra.mxu0 %v295
        %305 = vmatpush.msra.mxu0 %v294
        %306 = vmatpush.msra.mxu0 %v293
        %307 = vmatpush.msra.mxu0 %v292
        %308 = vmatpush.msra.mxu0 %v291
        %309 = vmatpush.msra.mxu0 %v290
        %310 = vmatpush.msra.mxu0 %v289
        %311 = vmatpush.msra.mxu0 %v288
        %312 = vmatpush.msra.mxu0 %v287
        %313 = vmatpush.msra.mxu0 %v286
        %314 = vmatpush.msra.mxu0 %v285
        %315 = vmatpush.msra.mxu0 %v284
        %316 = vmatpush.msra.mxu0 %v283
        %317 = vmatpush.msra.mxu0 %v282
        %318 = vmatmul.f32.gmra.mxu0 %v280
        %v319 = vpop.f32.mrf.mxu0
        %v320 = vadd.f32 %v300, %v319
        %321 = vmatmul.f32.gmra.mxu0 %v281
        %v322 = vpop.f32.mrf.mxu0
        %v323 = vadd.f32 %v300, %v322
        %324 = vdwg.mxu0
        %v325 = vxor.u32 %v320, 2147483648
        %v326 = vxor.u32 %v323, 2147483648
        %v327 = vmul.f32 %v325, 1.442695
        %v328 = vpow.pop %v327
        %v329 = vmul.f32 %v326, 1.442695
        %v330 = vpow.pop %v329
        %v331 = vadd.f32 %v328, 1.0
        %v332 = vadd.f32 %v330, 1.0
        %v333 = vrcp.pop %v331
        %v334 = vmul.f32 %v331, %v333
        %v335 = vsub.f32 1.0, %v334
        %v336 = vmul.f32 %v333, %v335
        %v337 = vadd.f32 %v333, %v336
        %vm338 = vweird.f32 %v331
        %vm339 = vweird.f32 %v333
        %vm340 = vmor %vm338, %vm339
        %v341 = vsel %vm340, %v333, %v337
        %v342 = vand.u32 2147483647, %v331
        %vm343 = vcmp.eq.f32.partialorder %v342, 8.507059e+37
        %v344 = vand.u32 %v331, 2147483648
        %v345 = vor.u32 1.1754944e-38, %v344
        %v346 = vsel %vm343, %v345, %v341
        %v347 = vmul.f32 1.0, %v346
        %v348 = vrcp.pop %v332
        %v349 = vmul.f32 %v332, %v348
        %v350 = vsub.f32 1.0, %v349
        %v351 = vmul.f32 %v348, %v350
        %v352 = vadd.f32 %v348, %v351
        %vm353 = vweird.f32 %v332
        %vm354 = vweird.f32 %v348
        %vm355 = vmor %vm353, %vm354
        %v356 = vsel %vm355, %v348, %v352
        %v357 = vand.u32 2147483647, %v332
        %vm358 = vcmp.eq.f32.partialorder %v357, 8.507059e+37
        %v359 = vand.u32 %v332, 2147483648
        %v360 = vor.u32 1.1754944e-38, %v359
        %v361 = vsel %vm358, %v360, %v356
        %v362 = vmul.f32 1.0, %v361
        %v363 = vld [vmem:[#allocation7] sm:$0xff]
        %v364 = vld [vmem:[#allocation7 + $0x8] sm:$0xff]
        %v365 = vld [vmem:[#allocation7 + $0x10] sm:$0xff]
        %v366 = vld [vmem:[#allocation7 + $0x18] sm:$0xff]
        %v367 = vld [vmem:[#allocation7 + $0x20] sm:$0xff]
        %v368 = vld [vmem:[#allocation7 + $0x28] sm:$0xff]
        %v369 = vld [vmem:[#allocation7 + $0x30] sm:$0xff]
        %v370 = vld [vmem:[#allocation7 + $0x38] sm:$0xff]
        %v371 = vld [vmem:[#allocation7 + $0x40] sm:$0xff]
        %v372 = vld [vmem:[#allocation7 + $0x48] sm:$0xff]
        %v373 = vld [vmem:[#allocation7 + $0x50] sm:$0xff]
        %v374 = vld [vmem:[#allocation7 + $0x58] sm:$0xff]
        %v375 = vld [vmem:[#allocation7 + $0x60] sm:$0xff]
        %v376 = vld [vmem:[#allocation7 + $0x68] sm:$0xff]
        %v377 = vld [vmem:[#allocation7 + $0x70] sm:$0xff]
        %v378 = vld [vmem:[#allocation7 + $0x78] sm:$0xff]
        %v379 = vld [vmem:[%s4] sm:$0x1]
        %v381 = vperm.slane %v379, 0
        %383 = vmatpush.msra.mxu0 %v378
        %384 = vmatpush.msra.mxu0 %v377
        %385 = vmatpush.msra.mxu0 %v376
        %386 = vmatpush.msra.mxu0 %v375
        %387 = vmatpush.msra.mxu0 %v374
        %388 = vmatpush.msra.mxu0 %v373
        %389 = vmatpush.msra.mxu0 %v372
        %390 = vmatpush.msra.mxu0 %v371
        %391 = vmatpush.msra.mxu0 %v370
        %392 = vmatpush.msra.mxu0 %v369
        %393 = vmatpush.msra.mxu0 %v368
        %394 = vmatpush.msra.mxu0 %v367
        %395 = vmatpush.msra.mxu0 %v366
        %396 = vmatpush.msra.mxu0 %v365
        %397 = vmatpush.msra.mxu0 %v364
        %398 = vmatpush.msra.mxu0 %v363
        %399 = vmatmul.f32.gmra.mxu0 %v347
        %v400 = vpop.f32.mrf.mxu0
        %v401 = vadd.f32 %v381, %v400
        %402 = vmatmul.f32.gmra.mxu0 %v362
        %v403 = vpop.f32.mrf.mxu0
        %v404 = vadd.f32 %v381, %v403
        %405 = vdwg.mxu0
        %v406 = vxor.u32 %v401, 2147483648
        %v407 = vxor.u32 %v404, 2147483648
        %v408 = vmul.f32 %v406, 1.442695
        %v409 = vpow.pop %v408
        %v410 = vmul.f32 %v407, 1.442695
        %v411 = vpow.pop %v410
        %v412 = vadd.f32 %v409, 1.0
        %v413 = vadd.f32 %v411, 1.0
        %v414 = vrcp.pop %v412
        %v415 = vmul.f32 %v412, %v414
        %v416 = vsub.f32 1.0, %v415
        %v417 = vmul.f32 %v414, %v416
        %v418 = vadd.f32 %v414, %v417
        %vm419 = vweird.f32 %v412
        %vm420 = vweird.f32 %v414
        %vm421 = vmor %vm419, %vm420
        %v422 = vsel %vm421, %v414, %v418
        %v423 = vand.u32 2147483647, %v412
        %vm424 = vcmp.eq.f32.partialorder %v423, 8.507059e+37
        %v425 = vand.u32 %v412, 2147483648
        %v426 = vor.u32 1.1754944e-38, %v425
        %v427 = vsel %vm424, %v426, %v422
        %v428 = vmul.f32 1.0, %v427
        %v429 = vrcp.pop %v413
        %v430 = vmul.f32 %v413, %v429
        %v431 = vsub.f32 1.0, %v430
        %v432 = vmul.f32 %v429, %v431
        %v433 = vadd.f32 %v429, %v432
        %vm434 = vweird.f32 %v413
        %vm435 = vweird.f32 %v429
        %vm436 = vmor %vm434, %vm435
        %v437 = vsel %vm436, %v429, %v433
        %v438 = vand.u32 2147483647, %v413
        %vm439 = vcmp.eq.f32.partialorder %v438, 8.507059e+37
        %v440 = vand.u32 %v413, 2147483648
        %v441 = vor.u32 1.1754944e-38, %v440
        %v442 = vsel %vm439, %v441, %v437
        %v443 = vmul.f32 1.0, %v442
        %444 = vst [vmem:[%s277] sm:$0xff] %v428
        %445 = vst [vmem:[%s277 + $0x8] sm:$0xff] %v443
        %s446 = sand.u32 %s141, 1
        %s447 = scalar_lea.sflag [#allocation4], %s446
        %s448 = sand.u32 %s141, 1
        %s449 = smul.addr %s448, 16
        %s450 = scalar_lea.vmem [#allocation8], %s449
        // Predicated region
        $region53: #{tpu_custom_call.1} parent=39 // pred_check
          %p451 = pneg %p151
        $region54: #{tpu_custom_call.1} parent=39 // pred_check_branch
          %453 = sbr.rel (%p451) target = $region56
        $region55: #{tpu_custom_call.1} parent=39 // pred_region
          %s454 = smul.u32 2, %s23
          %456 = vsyncadd %s447, 0
          %s457 = smul.addr %s454, 8
          %s458 = scalar_lea.hbm %s5, %s457
          %s459 = sshll.u32 %s450, 4
          %s460 = int_to_ptr.vmem [resolvable:$true] %s459
          %s461 = sshll.u32 %s458, 4
          %s462 = int_to_ptr.hbm [resolvable:$true] %s461
          %467 = dma.vmem_to_hbm [thread:$0]  %s460, 256, %s462, %s447, 128, 128, 8
        $region56: #{tpu_custom_call.1} parent=39 // pred_fallthru
          _
      $region40: #{tpu_custom_call.1} parent=5 // pred_fallthru
        _
      %p468 = scmp.le.s32.totalorder 2, %s18
      // Predicated region
      $region57: #{tpu_custom_call.1} parent=5 // pred_check
        %p469 = pneg %p468
      $region58: #{tpu_custom_call.1} parent=5 // pred_check_branch
        %471 = sbr.rel (%p469) target = $region60
      $region59: #{tpu_custom_call.1} parent=5 // pred_region
        %s472 = ssub.s32 %s18, 2
        // Predicated region
        $region61: #{tpu_custom_call.1} parent=59 // pred_check
          %p473 = pneg %p157
        $region62: #{tpu_custom_call.1} parent=59 // pred_check_branch
          %475 = sbr.rel (%p473) target = $region64
        $region63: #{tpu_custom_call.1} parent=59 // pred_region
          %s476 = sand.u32 %s142, 1
          %s477 = scalar_lea.sflag [#allocation4], %s476
          %s478 = sand.u32 %s142, 1
          %s479 = smul.addr %s478, 16
          %s480 = scalar_lea.vmem [#allocation8], %s479
          %482 = dma.done %s477, 256
        $region64: #{tpu_custom_call.1} parent=59 // pred_fallthru
          _
      $region60: #{tpu_custom_call.1} parent=5 // pred_fallthru
        _
    $region6: #{tpu_custom_call.1} parent=1 // loop_footer
      %s22 = sadd.s32 1, %s18
    $region7: #{tpu_custom_call.1} parent=1 // loop_footer_branch
      %17 = sbr.rel target = $region3
    $region8: #{tpu_custom_call.1} parent=1 // loop_exit
      _
    %483 = vsyncpa [#allocation3], 1
    %s484 = scalar_lea.sflag [#allocation3], 1
    %485 = vsyncpa %s484, 1
    %486 = vsyncpa [#allocation6], 1
    %487 = vsyncpa [#allocation4], 1
    %s488 = scalar_lea.sflag [#allocation4], 1
    %489 = vsyncpa %s488, 1

</llo_original>
